<compile_context>
chip_gen: v5e
topology: v5e:2x2
jax: 0.10.0
libtpu: 0.0.40
codegen_flags: <defaults>
</compile_context>

<pallas_src>
import functools

import jax
import jax.numpy as jnp
from jax.experimental import pallas as pl
from jax.experimental.pallas import tpu as pltpu


def _round_up(x, m):
    return ((x + m - 1) // m) * m


def _mlp_kernel(h_ref, wg_ref, bg_ref, wu_ref, bu_ref, wd_ref, bd_ref,
                out_ref, acc_ref):
    """One (token-tile, I-tile) step of d_proj(silu(g_proj(h)) * u_proj(h))."""
    k = pl.program_id(1)

    @pl.when(k == 0)
    def _():
        acc_ref[...] = jnp.zeros_like(acc_ref)

    h = h_ref[...]                                                    # (tm, Hp)

    # Gate / up projections for this intermediate slab, accumulated in f32.
    g = jnp.dot(h, wg_ref[...], preferred_element_type=jnp.float32)   # (tm, ti)
    g = g + bg_ref[...]
    u = jnp.dot(h, wu_ref[...], preferred_element_type=jnp.float32)   # (tm, ti)
    u = u + bu_ref[...]

    # SiLU(g) * u — elementwise chain stays in f32 (v5e VPU/EUP have no bf16);
    # cast only the MXU operand for the down-projection.
    gated = (g * jax.nn.sigmoid(g) * u).astype(wd_ref.dtype)          # (tm, ti)

    # Partial down-projection, accumulated across the I tiles.
    acc_ref[...] += jnp.dot(gated, wd_ref[...],
                            preferred_element_type=jnp.float32)       # (tm, Hp)

    @pl.when(k == pl.num_programs(1) - 1)
    def _():
        # bd is added exactly once, at the final reduction step.
        out_ref[...] = (acc_ref[...] + bd_ref[...]).astype(out_ref.dtype)


@functools.partial(jax.jit, static_argnames=("tm", "ti", "compute_dtype"))
def mlp_forward(h, wg, bg, wu, bu, wd, bd, *, tm=256, ti=512, compute_dtype=None):
    """h: [B, S, H]; weights pre-transposed to [in, out]; biases [1, out].

    tm: token tile (rows of the MXU), ti: intermediate-dim tile.
    compute_dtype: optional MXU operand dtype (e.g. jnp.bfloat16); accumulation
    is always f32 and the output keeps h.dtype.
    """
    B, S, H = h.shape
    I = wg.shape[1]
    T = B * S

    dt = jnp.dtype(compute_dtype) if compute_dtype is not None else h.dtype

    # ---- lane/sublane-dense padded sizes and effective tile sizes ----------
    Hp = _round_up(H, 128)                       # lane-dense hidden dim
    Ip = _round_up(I, 128)                       # lane-dense intermediate dim
    tm_eff = _round_up(min(tm, _round_up(T, 8)), 8)
    Tp = _round_up(T, tm_eff)                    # ragged token tile -> pad
    ti_eff = _round_up(min(ti, Ip), 128)
    Ip = _round_up(Ip, ti_eff)

    # ---- zero-pad operands (zero pads are numerically inert here) ----------
    h2 = jnp.pad(h.reshape(T, H).astype(dt), ((0, Tp - T), (0, Hp - H)))
    wg_p = jnp.pad(wg.astype(dt), ((0, Hp - H), (0, Ip - I)))
    wu_p = jnp.pad(wu.astype(dt), ((0, Hp - H), (0, Ip - I)))
    wd_p = jnp.pad(wd.astype(dt), ((0, Ip - I), (0, Hp - H)))
    bg_p = jnp.pad(bg.astype(jnp.float32), ((0, 0), (0, Ip - I)))
    bu_p = jnp.pad(bu.astype(jnp.float32), ((0, 0), (0, Ip - I)))
    bd_p = jnp.pad(bd.astype(jnp.float32), ((0, 0), (0, Hp - H)))

    grid = (Tp // tm_eff, Ip // ti_eff)          # reduction (I) axis last

    # ---- explicit VMEM budget: double-buffered streamed tiles + f32 acc ----
    dsz = jnp.dtype(dt).itemsize
    per_step = (tm_eff * Hp * dsz                # h tile
                + 2 * Hp * ti_eff * dsz          # wg, wu tiles
                + ti_eff * Hp * dsz              # wd tile
                + 4 * (2 * ti_eff + Hp)          # biases (f32)
                + tm_eff * Hp * h.dtype.itemsize)  # out tile
    vmem_need = 2 * per_step + 4 * tm_eff * Hp   # 2x buffering + accumulator
    vmem_limit = int(min(max(vmem_need + (4 << 20), 32 << 20), 120 << 20))

    cost = pl.CostEstimate(
        flops=6 * T * H * I,                     # three matmuls
        transcendentals=T * I,                   # sigmoid
        bytes_accessed=(2 * T * H * dsz          # h in + out
                        + 3 * H * I * dsz * (Tp // tm_eff)  # weights per token tile
                        + 4 * (2 * I + H)),      # biases
    )

    out2 = pl.pallas_call(
        _mlp_kernel,
        out_shape=jax.ShapeDtypeStruct((Tp, Hp), h.dtype),
        grid_spec=pltpu.PrefetchScalarGridSpec(
            num_scalar_prefetch=0,
            grid=grid,
            in_specs=[
                pl.BlockSpec((tm_eff, Hp), lambda i, k: (i, 0)),   # h tile
                pl.BlockSpec((Hp, ti_eff), lambda i, k: (0, k)),   # Wg^T slab
                pl.BlockSpec((1, ti_eff), lambda i, k: (0, k)),    # bg slab
                pl.BlockSpec((Hp, ti_eff), lambda i, k: (0, k)),   # Wu^T slab
                pl.BlockSpec((1, ti_eff), lambda i, k: (0, k)),    # bu slab
                pl.BlockSpec((ti_eff, Hp), lambda i, k: (k, 0)),   # Wd^T slab
                pl.BlockSpec((1, Hp), lambda i, k: (0, 0)),        # bd (constant)
            ],
            out_specs=pl.BlockSpec((tm_eff, Hp), lambda i, k: (i, 0)),
            scratch_shapes=[pltpu.VMEM((tm_eff, Hp), jnp.float32)],
        ),
        compiler_params=pltpu.CompilerParams(
            dimension_semantics=("parallel", "arbitrary"),
            vmem_limit_bytes=vmem_limit,
        ),
        cost_estimate=cost,
    )(h2, wg_p, bg_p, wu_p, bu_p, wd_p, bd_p)

    out = out2[:T, :H].reshape(B, S, H)
    gate_logit = None  # module always returns None for gate_logit
    return out, gate_logit


def _reference(h, wg, bg, wu, bu, wd, bd):
    g = jnp.einsum("bsh,hi->bsi", h, wg) + bg[0]
    u = jnp.einsum("bsh,hi->bsi", h, wu) + bu[0]
    gated = (g * jax.nn.sigmoid(g)) * u
    return jnp.einsum("bsi,ih->bsh", gated, wd) + bd[0]


if __name__ == "__main__":
    # Small config consistent with the module: hidden_size=32, intermediate_size=64,
    # mlp_bias=True; input h: [batch=2, seq=8, hidden=32].
    batch, seq, hidden, intermediate = 2, 8, 32, 64

    key = jax.random.PRNGKey(0)
    kh, kg, kbg, ku, kbu, kd, kbd = jax.random.split(key, 7)

    dtype = jnp.float32
    h = jax.random.normal(kh, (batch, seq, hidden), dtype=dtype)

    # Deterministic parameter init (uniform, fan-in scaled like nn.Linear).
    def lin_init(kw, kb, fan_in, fan_out):
        bound = 1.0 / (fan_in ** 0.5)
        w = jax.random.uniform(kw, (fan_in, fan_out), dtype, -bound, bound)  # [in, out]
        b = jax.random.uniform(kb, (1, fan_out), dtype, -bound, bound)
        return w, b

    wg, bg = lin_init(kg, kbg, hidden, intermediate)   # g_proj
    wu, bu = lin_init(ku, kbu, hidden, intermediate)   # u_proj
    wd, bd = lin_init(kd, kbd, intermediate, hidden)   # d_proj

    ref = _reference(h, wg, bg, wu, bu, wd, bd)

    # f32 operand path (tight tolerance).
    out, gate_logit = mlp_forward(h, wg, bg, wu, bu, wd, bd)
    out = jax.block_until_ready(out)
    assert gate_logit is None
    assert out.shape == (batch, seq, hidden)
    assert jnp.allclose(out, ref, atol=1e-5, rtol=1e-5), "f32 mismatch vs reference"

    # bf16 MXU-operand path (production config; f32 accumulation; loose tolerance).
    out_bf16, _ = mlp_forward(h, wg, bg, wu, bu, wd, bd, compute_dtype=jnp.bfloat16)
    out_bf16 = jax.block_until_ready(out_bf16)
    assert jnp.allclose(out_bf16.astype(jnp.float32), ref, atol=1e-1, rtol=1e-1), \
        "bf16 mismatch vs reference"

    print("KERNEL_OK")
</pallas_src>

<mosaic_0001>
module attributes {stable_mosaic.version = 11 : i64} {
  func.func @_mlp_kernel(%arg0: i32, %arg1: i32, %arg2: memref<16x128xf32, #tpu.memory_space<vmem>>, %arg3: memref<128x128xf32, #tpu.memory_space<vmem>>, %arg4: memref<1x128xf32, #tpu.memory_space<vmem>>, %arg5: memref<128x128xf32, #tpu.memory_space<vmem>>, %arg6: memref<1x128xf32, #tpu.memory_space<vmem>>, %arg7: memref<128x128xf32, #tpu.memory_space<vmem>>, %arg8: memref<1x128xf32, #tpu.memory_space<vmem>>, %arg9: memref<16x128xf32, #tpu.memory_space<vmem>>, %arg10: memref<16x128xf32, #tpu.memory_space<vmem>>) attributes {dimension_semantics = [#tpu.dimension_semantics<parallel>, #tpu.dimension_semantics<arbitrary>], iteration_bounds = array<i64: 1, 1>, scalar_prefetch = 0 : i64, scratch_operands = 1 : i64, tpu.core_type = #tpu.core_type<tc>, window_params = [{transform_indices = @transform_0, window_bounds = array<i64: 16, 128>}, {transform_indices = @transform_1, window_bounds = array<i64: 128, 128>}, {transform_indices = @transform_2, window_bounds = array<i64: 1, 128>}, {transform_indices = @transform_3, window_bounds = array<i64: 128, 128>}, {transform_indices = @transform_4, window_bounds = array<i64: 1, 128>}, {transform_indices = @transform_5, window_bounds = array<i64: 128, 128>}, {pipeline_mode = #tpu.pipeline_mode<synchronous>, transform_indices = @transform_6, window_bounds = array<i64: 1, 128>}, {transform_indices = @transform_7, window_bounds = array<i64: 16, 128>}]} {
    %c0_i32 = arith.constant 0 : i32
    %0 = arith.cmpi eq, %arg1, %c0_i32 : i32
    %1 = arith.extui %0 : i1 to i32
    %c0_i32_0 = arith.constant 0 : i32
    %2 = arith.cmpi ne, %1, %c0_i32_0 : i32
    scf.if %2 {
      %cst_21 = arith.constant 0.000000e+00 : f32
      %29 = vector.broadcast %cst_21 : f32 to vector<16x128xf32>
      %c0_22 = arith.constant 0 : index
      %c0_23 = arith.constant 0 : index
      %30 = vector.load %arg10[%c0_22, %c0_23] : memref<16x128xf32, #tpu.memory_space<vmem>>, vector<16x128xf32>
      tpu.vector_store %arg10[%c0_22, %c0_23], %29 {strides = array<i32>} : memref<16x128xf32, #tpu.memory_space<vmem>>, vector<16x128xf32>,
    } else {
    }
    %c0 = arith.constant 0 : index
    %c0_1 = arith.constant 0 : index
    %3 = vector.load %arg2[%c0, %c0_1] : memref<16x128xf32, #tpu.memory_space<vmem>>, vector<16x128xf32>
    %c0_2 = arith.constant 0 : index
    %c0_3 = arith.constant 0 : index
    %4 = vector.load %arg3[%c0_2, %c0_3] : memref<128x128xf32, #tpu.memory_space<vmem>>, vector<128x128xf32>
    %cst = arith.constant dense<0.000000e+00> : vector<16x128xf32>
    %5 = tpu.matmul %3, %4, %cst {dimension_numbers = #tpu.dot_dimension_numbers<[1], [0], [0], [1], [0, 0, 1, 1], [], []>} : vector<16x128xf32>, vector<128x128xf32>, vector<16x128xf32> -> vector<16x128xf32>
    %c0_4 = arith.constant 0 : index
    %c0_5 = arith.constant 0 : index
    %6 = vector.load %arg4[%c0_4, %c0_5] : memref<1x128xf32, #tpu.memory_space<vmem>>, vector<1x128xf32>
    %7 = vector.broadcast %6 : vector<1x128xf32> to vector<16x128xf32>
    %8 = arith.addf %5, %7 : vector<16x128xf32>
    %c0_6 = arith.constant 0 : index
    %c0_7 = arith.constant 0 : index
    %9 = vector.load %arg5[%c0_6, %c0_7] : memref<128x128xf32, #tpu.memory_space<vmem>>, vector<128x128xf32>
    %cst_8 = arith.constant dense<0.000000e+00> : vector<16x128xf32>
    %10 = tpu.matmul %3, %9, %cst_8 {dimension_numbers = #tpu.dot_dimension_numbers<[1], [0], [0], [1], [0, 0, 1, 1], [], []>} : vector<16x128xf32>, vector<128x128xf32>, vector<16x128xf32> -> vector<16x128xf32>
    %c0_9 = arith.constant 0 : index
    %c0_10 = arith.constant 0 : index
    %11 = vector.load %arg6[%c0_9, %c0_10] : memref<1x128xf32, #tpu.memory_space<vmem>>, vector<1x128xf32>
    %12 = vector.broadcast %11 : vector<1x128xf32> to vector<16x128xf32>
    %13 = arith.addf %10, %12 : vector<16x128xf32>
    %14 = arith.negf %8 : vector<16x128xf32>
    %15 = math.exp %14 : vector<16x128xf32>
    %cst_11 = arith.constant 1.000000e+00 : f32
    %16 = vector.broadcast %cst_11 : f32 to vector<16x128xf32>
    %17 = arith.addf %16, %15 : vector<16x128xf32>
    %18 = arith.divf %16, %17 : vector<16x128xf32>
    %19 = arith.mulf %8, %18 : vector<16x128xf32>
    %20 = arith.mulf %19, %13 : vector<16x128xf32>
    %c0_12 = arith.constant 0 : index
    %c0_13 = arith.constant 0 : index
    %21 = vector.load %arg10[%c0_12, %c0_13] : memref<16x128xf32, #tpu.memory_space<vmem>>, vector<16x128xf32>
    %c0_14 = arith.constant 0 : index
    %c0_15 = arith.constant 0 : index
    %22 = vector.load %arg7[%c0_14, %c0_15] : memref<128x128xf32, #tpu.memory_space<vmem>>, vector<128x128xf32>
    %cst_16 = arith.constant dense<0.000000e+00> : vector<16x128xf32>
    %23 = tpu.matmul %20, %22, %cst_16 {dimension_numbers = #tpu.dot_dimension_numbers<[1], [0], [0], [1], [0, 0, 1, 1], [], []>} : vector<16x128xf32>, vector<128x128xf32>, vector<16x128xf32> -> vector<16x128xf32>
    %24 = arith.addf %21, %23 : vector<16x128xf32>
    %c0_17 = arith.constant 0 : index
    %c0_18 = arith.constant 0 : index
    %25 = vector.load %arg10[%c0_17, %c0_18] : memref<16x128xf32, #tpu.memory_space<vmem>>, vector<16x128xf32>
    tpu.vector_store %arg10[%c0_17, %c0_18], %24 {strides = array<i32>} : memref<16x128xf32, #tpu.memory_space<vmem>>, vector<16x128xf32>,
    %c0_i32_19 = arith.constant 0 : i32
    %26 = arith.cmpi eq, %arg1, %c0_i32_19 : i32
    %27 = arith.extui %26 : i1 to i32
    %c0_i32_20 = arith.constant 0 : i32
    %28 = arith.cmpi ne, %27, %c0_i32_20 : i32
    scf.if %28 {
      %c0_21 = arith.constant 0 : index
      %c0_22 = arith.constant 0 : index
      %29 = vector.load %arg10[%c0_21, %c0_22] : memref<16x128xf32, #tpu.memory_space<vmem>>, vector<16x128xf32>
      %c0_23 = arith.constant 0 : index
      %c0_24 = arith.constant 0 : index
      %30 = vector.load %arg8[%c0_23, %c0_24] : memref<1x128xf32, #tpu.memory_space<vmem>>, vector<1x128xf32>
      %31 = vector.broadcast %30 : vector<1x128xf32> to vector<16x128xf32>
      %32 = arith.addf %29, %31 : vector<16x128xf32>
      %c0_25 = arith.constant 0 : index
      %c0_26 = arith.constant 0 : index
      %33 = vector.load %arg9[%c0_25, %c0_26] : memref<16x128xf32, #tpu.memory_space<vmem>>, vector<16x128xf32>
      tpu.vector_store %arg9[%c0_25, %c0_26], %32 {strides = array<i32>} : memref<16x128xf32, #tpu.memory_space<vmem>>, vector<16x128xf32>,
    } else {
    }
    return
  }
  func.func @transform_0(%arg0: i32, %arg1: i32) -> (i32, i32) {
    %c0_i32 = arith.constant 0 : i32
    %c0_i32_0 = arith.constant 0 : i32
    return %arg0, %c0_i32 : i32, i32
  }
  func.func @transform_1(%arg0: i32, %arg1: i32) -> (i32, i32) {
    %c0_i32 = arith.constant 0 : i32
    %c0_i32_0 = arith.constant 0 : i32
    return %c0_i32, %arg1 : i32, i32
  }
  func.func @transform_2(%arg0: i32, %arg1: i32) -> (i32, i32) {
    %c0_i32 = arith.constant 0 : i32
    %c0_i32_0 = arith.constant 0 : i32
    return %c0_i32, %arg1 : i32, i32
  }
  func.func @transform_3(%arg0: i32, %arg1: i32) -> (i32, i32) {
    %c0_i32 = arith.constant 0 : i32
    %c0_i32_0 = arith.constant 0 : i32
    return %c0_i32, %arg1 : i32, i32
  }
  func.func @transform_4(%arg0: i32, %arg1: i32) -> (i32, i32) {
    %c0_i32 = arith.constant 0 : i32
    %c0_i32_0 = arith.constant 0 : i32
    return %c0_i32, %arg1 : i32, i32
  }
  func.func @transform_5(%arg0: i32, %arg1: i32) -> (i32, i32) {
    %c0_i32 = arith.constant 0 : i32
    %c0_i32_0 = arith.constant 0 : i32
    return %arg1, %c0_i32 : i32, i32
  }
  func.func @transform_6(%arg0: i32, %arg1: i32) -> (i32, i32) {
    %c0_i32 = arith.constant 0 : i32
    %c0_i32_0 = arith.constant 0 : i32
    %c0_i32_1 = arith.constant 0 : i32
    return %c0_i32, %c0_i32_0 : i32, i32
  }
  func.func @transform_7(%arg0: i32, %arg1: i32) -> (i32, i32) {
    %c0_i32 = arith.constant 0 : i32
    %c0_i32_0 = arith.constant 0 : i32
    return %arg0, %c0_i32 : i32, i32
  }
}

</mosaic_0001>

<llo_original>
// kernel: mlp_forward.1
$region0: #{mlp_forward.1}
  #allocation0 [shape = 'u32[]', space=smem, size = 0x4, offset = 0x4, fixed_abs, tag = 'smem constant byte address 0x4 - core index']
  #allocation1 [shape = 'u32[72,128]{1,0:T(1,128)}', space=vmem, size = 0x9000, scoped, tag = 'internal scratch']
  #allocation2 [shape = 'f32[16,128]{1,0:T(8,128)}', space=vmem, size = 0x2000, scoped, tag = 'scratch operand']
  %s0 = inlined_call_operand.vmem [shape: f32[16,128], index: 0, kind: input, shape index: {}]
  %s1 = inlined_call_operand.vmem [shape: f32[128,128], index: 1, kind: input, shape index: {}]
  %s2 = inlined_call_operand.vmem [shape: f32[1,128], index: 2, kind: input, shape index: {}]
  %s3 = inlined_call_operand.vmem [shape: f32[128,128], index: 3, kind: input, shape index: {}]
  %s4 = inlined_call_operand.vmem [shape: f32[1,128], index: 4, kind: input, shape index: {}]
  %s5 = inlined_call_operand.vmem [shape: f32[128,128], index: 5, kind: input, shape index: {}]
  %s6 = inlined_call_operand.vmem [shape: f32[1,128], index: 6, kind: input, shape index: {}]
  %s7 = inlined_call_operand.vmem [shape: f32[16,128], index: 7, kind: output, shape index: {}]
  %s8 = sld [smem:[#allocation0]]
  $region46: #{mlp_forward.1} parent=0
    _
  %s10 = ssub.s32 1, %s8
  %s11 = scalar_select 0, %s10, %s8
  // Predicated region
  $region2: #{mlp_forward.1} parent=0 // pred_check
    _
  $region3: #{mlp_forward.1} parent=0 // pred_check_branch
    %13 = sbr.rel (0) target = $region5
  $region4: #{mlp_forward.1} parent=0 // pred_region
    _
  $region5: #{mlp_forward.1} parent=0 // pred_fallthru
    _
  // Predicated region
  $region6: #{mlp_forward.1} parent=0 // pred_check
    _
  $region7: #{mlp_forward.1} parent=0 // pred_check_branch
    %15 = sbr.rel (0) target = $region9
  $region8: #{mlp_forward.1} parent=0 // pred_region
    _
  $region9: #{mlp_forward.1} parent=0 // pred_fallthru
    _
  // Predicated region
  $region10: #{mlp_forward.1} parent=0 // pred_check
    _
  $region11: #{mlp_forward.1} parent=0 // pred_check_branch
    %17 = sbr.rel (0) target = $region13
  $region12: #{mlp_forward.1} parent=0 // pred_region
    _
  $region13: #{mlp_forward.1} parent=0 // pred_fallthru
    _
  // Predicated region
  $region14: #{mlp_forward.1} parent=0 // pred_check
    _
  $region15: #{mlp_forward.1} parent=0 // pred_check_branch
    %19 = sbr.rel (0) target = $region17
  $region16: #{mlp_forward.1} parent=0 // pred_region
    _
  $region17: #{mlp_forward.1} parent=0 // pred_fallthru
    _
  // Predicated region
  $region18: #{mlp_forward.1} parent=0 // pred_check
    _
  $region19: #{mlp_forward.1} parent=0 // pred_check_branch
    %21 = sbr.rel (0) target = $region21
  $region20: #{mlp_forward.1} parent=0 // pred_region
    _
  $region21: #{mlp_forward.1} parent=0 // pred_fallthru
    _
  // Predicated region
  $region22: #{mlp_forward.1} parent=0 // pred_check
    _
  $region23: #{mlp_forward.1} parent=0 // pred_check_branch
    %23 = sbr.rel (0) target = $region25
  $region24: #{mlp_forward.1} parent=0 // pred_region
    _
  $region25: #{mlp_forward.1} parent=0 // pred_fallthru
    _
  // Predicated region
  $region26: #{mlp_forward.1} parent=0 // pred_check
    _
  $region27: #{mlp_forward.1} parent=0 // pred_check_branch
    %25 = sbr.rel (0) target = $region29
  $region28: #{mlp_forward.1} parent=0 // pred_region
    _
  $region29: #{mlp_forward.1} parent=0 // pred_fallthru
    _
  %p26 = scmp.eq.s32.totalorder 0, 0
  // Predicated region
  $region30: #{mlp_forward.1} parent=0 // pred_check
    %p27 = pneg %p26
  $region31: #{mlp_forward.1} parent=0 // pred_check_branch
    %29 = sbr.rel (%p27) target = $region33
  $region32: #{mlp_forward.1} parent=0 // pred_region
    %30 = vst [vmem:[#allocation2] sm:$0xff] 0.0
    %31 = vst [vmem:[#allocation2 + $0x8] sm:$0xff] 0.0
  $region33: #{mlp_forward.1} parent=0 // pred_fallthru
    _
  %v32 = vld [vmem:[%s0] sm:$0xff]
  %v33 = vld [vmem:[%s0 + $0x8] sm:$0xff]
  %v34 = vld [vmem:[%s1] sm:$0xff]
  %v35 = vld [vmem:[%s1 + $0x8] sm:$0xff]
  %v36 = vld [vmem:[%s1 + $0x10] sm:$0xff]
  %v37 = vld [vmem:[%s1 + $0x18] sm:$0xff]
  %v38 = vld [vmem:[%s1 + $0x20] sm:$0xff]
  %v39 = vld [vmem:[%s1 + $0x28] sm:$0xff]
  %v40 = vld [vmem:[%s1 + $0x30] sm:$0xff]
  %v41 = vld [vmem:[%s1 + $0x38] sm:$0xff]
  %v42 = vld [vmem:[%s1 + $0x40] sm:$0xff]
  %v43 = vld [vmem:[%s1 + $0x48] sm:$0xff]
  %v44 = vld [vmem:[%s1 + $0x50] sm:$0xff]
  %v45 = vld [vmem:[%s1 + $0x58] sm:$0xff]
  %v46 = vld [vmem:[%s1 + $0x60] sm:$0xff]
  %v47 = vld [vmem:[%s1 + $0x68] sm:$0xff]
  %v48 = vld [vmem:[%s1 + $0x70] sm:$0xff]
  %v49 = vld [vmem:[%s1 + $0x78] sm:$0xff]
  %v50 = vld [vmem:[%s2] sm:$0x1]
  %v52 = vperm.slane %v50, 0
  %54 = vmatpush.msra.mxu0 %v49
  %55 = vmatpush.msra.mxu0 %v48
  %56 = vmatpush.msra.mxu0 %v47
  %57 = vmatpush.msra.mxu0 %v46
  %58 = vmatpush.msra.mxu0 %v45
  %59 = vmatpush.msra.mxu0 %v44
  %60 = vmatpush.msra.mxu0 %v43
  %61 = vmatpush.msra.mxu0 %v42
  %62 = vmatpush.msra.mxu0 %v41
  %63 = vmatpush.msra.mxu0 %v40
  %64 = vmatpush.msra.mxu0 %v39
  %65 = vmatpush.msra.mxu0 %v38
  %66 = vmatpush.msra.mxu0 %v37
  %67 = vmatpush.msra.mxu0 %v36
  %68 = vmatpush.msra.mxu0 %v35
  %69 = vmatpush.msra.mxu0 %v34
  %70 = vmatmul.f32.gmra.mxu0 %v32
  %v71 = vpop.f32.mrf.mxu0
  %v72 = vadd.f32 %v52, %v71
  %73 = vmatmul.f32.gmra.mxu0 %v33
  %v74 = vpop.f32.mrf.mxu0
  %v75 = vadd.f32 %v52, %v74
  %76 = vdwg.mxu0
  %v77 = vld [vmem:[%s3] sm:$0xff]
  %v78 = vld [vmem:[%s3 + $0x8] sm:$0xff]
  %v79 = vld [vmem:[%s3 + $0x10] sm:$0xff]
  %v80 = vld [vmem:[%s3 + $0x18] sm:$0xff]
  %v81 = vld [vmem:[%s3 + $0x20] sm:$0xff]
  %v82 = vld [vmem:[%s3 + $0x28] sm:$0xff]
  %v83 = vld [vmem:[%s3 + $0x30] sm:$0xff]
  %v84 = vld [vmem:[%s3 + $0x38] sm:$0xff]
  %v85 = vld [vmem:[%s3 + $0x40] sm:$0xff]
  %v86 = vld [vmem:[%s3 + $0x48] sm:$0xff]
  %v87 = vld [vmem:[%s3 + $0x50] sm:$0xff]
  %v88 = vld [vmem:[%s3 + $0x58] sm:$0xff]
  %v89 = vld [vmem:[%s3 + $0x60] sm:$0xff]
  %v90 = vld [vmem:[%s3 + $0x68] sm:$0xff]
  %v91 = vld [vmem:[%s3 + $0x70] sm:$0xff]
  %v92 = vld [vmem:[%s3 + $0x78] sm:$0xff]
  %v93 = vld [vmem:[%s4] sm:$0x1]
  %v95 = vperm.slane %v93, 0
  %97 = vmatpush.msra.mxu0 %v92
  %98 = vmatpush.msra.mxu0 %v91
  %99 = vmatpush.msra.mxu0 %v90
  %100 = vmatpush.msra.mxu0 %v89
  %101 = vmatpush.msra.mxu0 %v88
  %102 = vmatpush.msra.mxu0 %v87
  %103 = vmatpush.msra.mxu0 %v86
  %104 = vmatpush.msra.mxu0 %v85
  %105 = vmatpush.msra.mxu0 %v84
  %106 = vmatpush.msra.mxu0 %v83
  %107 = vmatpush.msra.mxu0 %v82
  %108 = vmatpush.msra.mxu0 %v81
  %109 = vmatpush.msra.mxu0 %v80
  %110 = vmatpush.msra.mxu0 %v79
  %111 = vmatpush.msra.mxu0 %v78
  %112 = vmatpush.msra.mxu0 %v77
  %113 = vmatmul.f32.gmra.mxu0 %v32
  %v114 = vpop.f32.mrf.mxu0
  %v115 = vadd.f32 %v95, %v114
  %116 = vmatmul.f32.gmra.mxu0 %v33
  %v117 = vpop.f32.mrf.mxu0
  %v118 = vadd.f32 %v95, %v117
  %119 = vdwg.mxu0
  %v120 = vxor.u32 %v72, 2147483648
  %v121 = vxor.u32 %v75, 2147483648
  %v122 = vmul.f32 %v120, 1.442695
  %v123 = vpow.pop %v122
  %v124 = vmul.f32 %v121, 1.442695
  %v125 = vpow.pop %v124
  %v126 = vadd.f32 %v123, 1.0
  %v127 = vadd.f32 %v125, 1.0
  %v128 = vrcp.pop %v126
  %v129 = vmul.f32 %v126, %v128
  %v130 = vsub.f32 1.0, %v129
  %v131 = vmul.f32 %v128, %v130
  %v132 = vadd.f32 %v128, %v131
  %vm133 = vweird.f32 %v126
  %vm134 = vweird.f32 %v128
  %vm135 = vmor %vm133, %vm134
  %v136 = vsel %vm135, %v128, %v132
  %v137 = vand.u32 2147483647, %v126
  %vm138 = vcmp.eq.f32.partialorder %v137, 8.507059e+37
  %v139 = vand.u32 %v126, 2147483648
  %v140 = vor.u32 1.1754944e-38, %v139
  %v141 = vsel %vm138, %v140, %v136
  %v142 = vmul.f32 1.0, %v141
  %v143 = vrcp.pop %v127
  %v144 = vmul.f32 %v127, %v143
  %v145 = vsub.f32 1.0, %v144
  %v146 = vmul.f32 %v143, %v145
  %v147 = vadd.f32 %v143, %v146
  %vm148 = vweird.f32 %v127
  %vm149 = vweird.f32 %v143
  %vm150 = vmor %vm148, %vm149
  %v151 = vsel %vm150, %v143, %v147
  %v152 = vand.u32 2147483647, %v127
  %vm153 = vcmp.eq.f32.partialorder %v152, 8.507059e+37
  %v154 = vand.u32 %v127, 2147483648
  %v155 = vor.u32 1.1754944e-38, %v154
  %v156 = vsel %vm153, %v155, %v151
  %v157 = vmul.f32 1.0, %v156
  %v158 = vmul.f32 %v72, %v142
  %v159 = vmul.f32 %v75, %v157
  %v160 = vmul.f32 %v158, %v115
  %v161 = vmul.f32 %v159, %v118
  %v162 = vld [vmem:[#allocation2] sm:$0xff]
  %v163 = vld [vmem:[#allocation2 + $0x8] sm:$0xff]
  %v164 = vld [vmem:[%s5] sm:$0xff]
  %v165 = vld [vmem:[%s5 + $0x8] sm:$0xff]
  %v166 = vld [vmem:[%s5 + $0x10] sm:$0xff]
  %v167 = vld [vmem:[%s5 + $0x18] sm:$0xff]
  %v168 = vld [vmem:[%s5 + $0x20] sm:$0xff]
  %v169 = vld [vmem:[%s5 + $0x28] sm:$0xff]
  %v170 = vld [vmem:[%s5 + $0x30] sm:$0xff]
  %v171 = vld [vmem:[%s5 + $0x38] sm:$0xff]
  %v172 = vld [vmem:[%s5 + $0x40] sm:$0xff]
  %v173 = vld [vmem:[%s5 + $0x48] sm:$0xff]
  %v174 = vld [vmem:[%s5 + $0x50] sm:$0xff]
  %v175 = vld [vmem:[%s5 + $0x58] sm:$0xff]
  %v176 = vld [vmem:[%s5 + $0x60] sm:$0xff]
  %v177 = vld [vmem:[%s5 + $0x68] sm:$0xff]
  %v178 = vld [vmem:[%s5 + $0x70] sm:$0xff]
  %v179 = vld [vmem:[%s5 + $0x78] sm:$0xff]
  %180 = vmatpush.msra.mxu0 %v179
  %181 = vmatpush.msra.mxu0 %v178
  %182 = vmatpush.msra.mxu0 %v177
  %183 = vmatpush.msra.mxu0 %v176
  %184 = vmatpush.msra.mxu0 %v175
  %185 = vmatpush.msra.mxu0 %v174
  %186 = vmatpush.msra.mxu0 %v173
  %187 = vmatpush.msra.mxu0 %v172
  %188 = vmatpush.msra.mxu0 %v171
  %189 = vmatpush.msra.mxu0 %v170
  %190 = vmatpush.msra.mxu0 %v169
  %191 = vmatpush.msra.mxu0 %v168
  %192 = vmatpush.msra.mxu0 %v167
  %193 = vmatpush.msra.mxu0 %v166
  %194 = vmatpush.msra.mxu0 %v165
  %195 = vmatpush.msra.mxu0 %v164
  %196 = vmatmul.f32.gmra.mxu0 %v160
  %v197 = vpop.f32.mrf.mxu0
  %v198 = vadd.f32 0.0, %v197
  %199 = vmatmul.f32.gmra.mxu0 %v161
  %v200 = vpop.f32.mrf.mxu0
  %v201 = vadd.f32 0.0, %v200
  %202 = vdwg.mxu0
  %v203 = vadd.f32 %v162, %v198
  %v204 = vadd.f32 %v163, %v201
  %205 = vst [vmem:[#allocation2] sm:$0xff] %v203
  %206 = vst [vmem:[#allocation2 + $0x8] sm:$0xff] %v204
  // Predicated region
  $region34: #{mlp_forward.1} parent=0 // pred_check
    %p207 = pneg %p26
  $region35: #{mlp_forward.1} parent=0 // pred_check_branch
    %209 = sbr.rel (%p207) target = $region37
  $region36: #{mlp_forward.1} parent=0 // pred_region
    %v210 = vld [vmem:[#allocation2] sm:$0xff]
    %v211 = vld [vmem:[#allocation2 + $0x8] sm:$0xff]
    %v212 = vld [vmem:[%s6] sm:$0x1]
    %v214 = vperm.slane %v212, 0
    %v216 = vadd.f32 %v210, %v214
    %v217 = vadd.f32 %v211, %v214
    %218 = vst [vmem:[%s7] sm:$0xff] %v216
    %219 = vst [vmem:[%s7 + $0x8] sm:$0xff] %v217
  $region37: #{mlp_forward.1} parent=0 // pred_fallthru
    _
  // Predicated region
  $region38: #{mlp_forward.1} parent=0 // pred_check
    _
  $region39: #{mlp_forward.1} parent=0 // pred_check_branch
    %221 = sbr.rel (0) target = $region41
  $region40: #{mlp_forward.1} parent=0 // pred_region
    _
  $region41: #{mlp_forward.1} parent=0 // pred_fallthru
    _
  // Predicated region
  $region42: #{mlp_forward.1} parent=0 // pred_check
    _
  $region43: #{mlp_forward.1} parent=0 // pred_check_branch
    %223 = sbr.rel (0) target = $region45
  $region44: #{mlp_forward.1} parent=0 // pred_region
    _
  $region45: #{mlp_forward.1} parent=0 // pred_fallthru
    _

</llo_original>
